<compile_context>
chip_gen: v7x
topology: tpu7x:2x2x1
jax: 0.10.0
libtpu: 0.0.40
codegen_flags: <defaults>
</compile_context>

<pallas_src>
import jax
import jax.numpy as jnp
from jax.experimental import pallas as pl
from jax.experimental.pallas import tpu as pltpu

_NEG_SLOPE = 0.2            # LeakyReLU slope of the PyTorch module
_MIN_BLOCK_ROWS = 128       # smallest streamed tile (multiple of 8 sublanes)
_DEF_BLOCK_ROWS = 4096      # ~2 MiB f32 x-tile -> near HBM roofline


def _round_up(n, m):
    return ((n + m - 1) // m) * m


def _cdiv(a, b):
    return -(-a // b)


def _next_pow2(n):
    m = 1
    while m < n:
        m *= 2
    return m


def _phase_mlp_kernel(x_ref, w1_ref, b1_ref, w2_ref, b2_ref, o_ref):
    """One batch tile: x:(TB, Kp) -> o:(TB, p).

    w1_ref:(Kp, Hp), b1_ref:(1, Hp), w2_ref:(Hp, p) are grid-resident VMEM
    blocks (constant index_map -> DMA'd once); b2_ref is a (1, 1) SMEM scalar.
    In bf16 mode the weights arrive as bf16 and x / h are cast on the VPU;
    both matmuls always accumulate in f32 on the MXU.
    """
    x = x_ref[...].astype(w1_ref.dtype)                     # no-op in fp32 mode
    h = jnp.dot(x, w1_ref[...], preferred_element_type=jnp.float32) + b1_ref[...]
    h = jnp.maximum(h, _NEG_SLOPE * h)                      # LeakyReLU(0.2)
    o = jnp.dot(h.astype(w2_ref.dtype), w2_ref[...],
                preferred_element_type=jnp.float32) + b2_ref[0, 0]
    o_ref[...] = o.astype(o_ref.dtype)


def pack_phase_params(w1, b1, w2, b2, *, use_bf16_matmul=False):
    """Pre-pack the tiny MLP weights for batch-in-lanes execution.

    Call ONCE and reuse across forward calls (the kron/tile replication should
    not be re-materialized per call).

    w1: (nboson, H)  -- transposed w.r.t. torch nn.Linear's (H, nboson) weight
    b1: (H,) or (1, H)
    w2: (H, 1) or (H,)
    b2: scalar / (1,) / (1, 1)
    """
    nboson, H = w1.shape
    w1 = jnp.asarray(w1, jnp.float32)
    b1 = jnp.reshape(jnp.asarray(b1, jnp.float32), (1, H))
    w2 = jnp.reshape(jnp.asarray(w2, jnp.float32), (H, 1))
    b2 = jnp.reshape(jnp.asarray(b2, jnp.float32), (1, 1))

    # Batch-in-lanes packing: p samples side by side in one 128-wide row.
    # nboson is zero-padded to the next power of two (a divisor of 128) so the
    # packing applies even when 128 % nboson != 0 (padded weight rows are zero,
    # so the result is exact).
    if nboson <= 128:
        nb_pad = _next_pow2(nboson)
        p = 128 // nb_pad
    else:
        nb_pad, p = nboson, 1
    if nb_pad != nboson:
        w1 = jnp.pad(w1, ((0, nb_pad - nboson), (0, 0)))

    eye = jnp.eye(p, dtype=jnp.float32)
    mm_dtype = jnp.bfloat16 if use_bf16_matmul else jnp.float32
    w1p = jnp.kron(eye, w1).astype(mm_dtype)     # (p*nb_pad, p*H) block-diag
    w2p = jnp.kron(eye, w2).astype(mm_dtype)     # (p*H, p)       block-diag
    b1p = jnp.tile(b1, (1, p))                   # (1, p*H), kept f32

    return dict(w1p=w1p, b1p=b1p, w2p=w2p, b2=b2,
                nboson=nboson, nb_pad=nb_pad, p=p, H=H)


def phase_forward_packed(x, params, *, target_block_rows=_DEF_BLOCK_ROWS):
    """Forward pass with pre-packed params.  x: (B, nboson) -> (B, 1) f32."""
    nboson, nb_pad, p, H = params["nboson"], params["nb_pad"], params["p"], params["H"]
    w1p, b1p, w2p, b2 = params["w1p"], params["b1p"], params["w2p"], params["b2"]

    B = x.shape[0]
    assert x.shape[1] == nboson
    x = x.astype(jnp.float32)

    Kp = p * nb_pad
    Hp = p * H

    # --- pack p samples per 128-lane row (free row-major reshape when B % p
    # == 0 and nboson already divides 128) -----------------------------------
    rows = _cdiv(B, p)
    pad_rows = rows * p - B
    pad_feat = nb_pad - nboson
    if pad_rows or pad_feat:
        # Only copies x in the ragged case; the common large, p-divisible batch
        # skips this entirely (no extra HBM traffic).
        x = jnp.pad(x, ((0, pad_rows), (0, pad_feat)))
    xp = x.reshape(rows, Kp)

    # --- batch tiling: aim for >= 8 pipelined grid steps, tiles capped at
    # target_block_rows (~2 MiB f32 x-tile by default). Partial last tile is
    # handled by Pallas (no whole-batch padding). -----------------------------
    block_rows = _round_up(_cdiv(rows, 8), 8)
    block_rows = max(_MIN_BLOCK_ROWS,
                     min(block_rows, _round_up(target_block_rows, 8)))
    if block_rows >= rows:
        block_rows = rows                       # single full-extent block
    grid = (_cdiv(rows, block_rows),)

    out = pl.pallas_call(
        _phase_mlp_kernel,
        out_shape=jax.ShapeDtypeStruct((rows, p), jnp.float32),
        grid=grid,
        in_specs=[
            pl.BlockSpec((block_rows, Kp), lambda i: (i, 0)),    # streamed x tiles
            pl.BlockSpec((Kp, Hp), lambda i: (0, 0)),            # resident w1'
            pl.BlockSpec((1, Hp), lambda i: (0, 0)),             # resident b1'
            pl.BlockSpec((Hp, p), lambda i: (0, 0)),             # resident w2'
            pl.BlockSpec((1, 1), lambda i: (0, 0),
                         memory_space=pltpu.MemorySpace.SMEM),   # scalar b2
        ],
        out_specs=pl.BlockSpec((block_rows, p), lambda i: (i, 0)),
        compiler_params=pltpu.CompilerParams(
            dimension_semantics=("parallel",),
            vmem_limit_bytes=40 * 1024 * 1024,
        ),
    )(xp, w1p, b1p, w2p, b2)

    return out.reshape(rows * p, 1)[:B]


def phase_of_wave_function(x, w1, b1, w2, b2, *, use_bf16_matmul=False,
                           target_block_rows=_DEF_BLOCK_ROWS):
    """Convenience one-shot wrapper (packs weights per call).  For repeated
    forward passes, call pack_phase_params() once and reuse with
    phase_forward_packed()."""
    params = pack_phase_params(w1, b1, w2, b2, use_bf16_matmul=use_bf16_matmul)
    return phase_forward_packed(x, params, target_block_rows=target_block_rows)


if __name__ == "__main__":
    # Module hyperparameters consistent with the PyTorch __init__:
    nmat, ndim, alpha_phase = 3, 2, 2
    nboson = (nmat * nmat - 1) * ndim          # 16
    hidden = alpha_phase * nboson              # 32

    key = jax.random.PRNGKey(0)
    kx, kw1, kb1, kw2, kb2, kx2 = jax.random.split(key, 6)

    # Deterministic parameter init (PyTorch nn.Linear-style uniform bounds).
    bound1 = 1.0 / jnp.sqrt(nboson)
    bound2 = 1.0 / jnp.sqrt(hidden)
    w1 = jax.random.uniform(kw1, (nboson, hidden), jnp.float32, -bound1, bound1)
    b1 = jax.random.uniform(kb1, (hidden,), jnp.float32, -bound1, bound1)
    w2 = jax.random.uniform(kw2, (hidden, 1), jnp.float32, -bound2, bound2)
    b2 = jax.random.uniform(kb2, (1,), jnp.float32, -bound2, bound2)

    def ref_forward(xx):
        h = xx @ w1 + b1
        h = jnp.where(h >= 0, h, 0.2 * h)
        return h @ w2 + b2

    # 1) Tiny batch: single-step grid, full-extent blocks.
    batch = 10                                  # deliberately not a multiple of 8
    x = jax.random.normal(kx, (batch, nboson), dtype=jnp.float32)
    phase = jax.block_until_ready(phase_of_wave_function(x, w1, b1, w2, b2))
    assert phase.shape == (batch, 1)
    err1 = float(jnp.max(jnp.abs(phase - ref_forward(x))))
    assert jnp.allclose(phase, ref_forward(x), atol=1e-5, rtol=1e-5), err1

    # 2) Pipelined path: multi-step grid with a partial last tile (no
    #    whole-batch pad), weights packed once and reused.
    batch2 = 1030
    x2 = jax.random.normal(kx2, (batch2, nboson), dtype=jnp.float32)
    params = pack_phase_params(w1, b1, w2, b2)
    phase2 = jax.block_until_ready(phase_forward_packed(x2, params))
    assert phase2.shape == (batch2, 1)
    err2 = float(jnp.max(jnp.abs(phase2 - ref_forward(x2))))
    assert jnp.allclose(phase2, ref_forward(x2), atol=5e-5, rtol=5e-5), err2

    # 3) Optional bf16-MXU path (perf option for v5e/v7x); looser tolerance
    #    versus the fp32 reference.
    params_bf16 = pack_phase_params(w1, b1, w2, b2, use_bf16_matmul=True)
    phase3 = jax.block_until_ready(phase_forward_packed(x2, params_bf16))
    err3 = float(jnp.max(jnp.abs(phase3 - ref_forward(x2))))
    assert jnp.allclose(phase3, ref_forward(x2), atol=5e-2, rtol=5e-2), err3

    print("KERNEL_OK")
</pallas_src>

<mosaic_0001>
module attributes {stable_mosaic.version = 11 : i64} {
  func.func @_phase_mlp_kernel(%arg0: i32, %arg1: memref<2x128xf32, #tpu.memory_space<vmem>>, %arg2: memref<128x256xf32, #tpu.memory_space<vmem>>, %arg3: memref<1x256xf32, #tpu.memory_space<vmem>>, %arg4: memref<256x8xf32, #tpu.memory_space<vmem>>, %arg5: memref<1x1xf32, #tpu.memory_space<smem>>, %arg6: memref<2x8xf32, #tpu.memory_space<vmem>>) attributes {dimension_semantics = [#tpu.dimension_semantics<parallel>], iteration_bounds = array<i64: 1>, scalar_prefetch = 0 : i64, scratch_operands = 0 : i64, tpu.core_type = #tpu.core_type<tc>, window_params = [{transform_indices = @transform_0, window_bounds = array<i64: 2, 128>}, {pipeline_mode = #tpu.pipeline_mode<synchronous>, transform_indices = @transform_1, window_bounds = array<i64: 128, 256>}, {pipeline_mode = #tpu.pipeline_mode<synchronous>, transform_indices = @transform_2, window_bounds = array<i64: 1, 256>}, {pipeline_mode = #tpu.pipeline_mode<synchronous>, transform_indices = @transform_3, window_bounds = array<i64: 256, 8>}, {transform_indices = @transform_4, window_bounds = array<i64: 1, 1>}, {transform_indices = @transform_5, window_bounds = array<i64: 2, 8>}]} {
    %c0 = arith.constant 0 : index
    %c0_0 = arith.constant 0 : index
    %0 = vector.load %arg1[%c0, %c0_0] : memref<2x128xf32, #tpu.memory_space<vmem>>, vector<2x128xf32>
    %c0_1 = arith.constant 0 : index
    %c0_2 = arith.constant 0 : index
    %1 = vector.load %arg2[%c0_1, %c0_2] : memref<128x256xf32, #tpu.memory_space<vmem>>, vector<128x256xf32>
    %cst = arith.constant dense<0.000000e+00> : vector<2x256xf32>
    %2 = tpu.matmul %0, %1, %cst {dimension_numbers = #tpu.dot_dimension_numbers<[1], [0], [0], [1], [0, 0, 1, 1], [], []>} : vector<2x128xf32>, vector<128x256xf32>, vector<2x256xf32> -> vector<2x256xf32>
    %c0_3 = arith.constant 0 : index
    %c0_4 = arith.constant 0 : index
    %3 = vector.load %arg3[%c0_3, %c0_4] : memref<1x256xf32, #tpu.memory_space<vmem>>, vector<1x256xf32>
    %4 = vector.broadcast %3 : vector<1x256xf32> to vector<2x256xf32>
    %5 = arith.addf %2, %4 : vector<2x256xf32>
    %cst_5 = arith.constant 2.000000e-01 : f32
    %6 = vector.broadcast %cst_5 : f32 to vector<2x256xf32>
    %7 = arith.mulf %6, %5 : vector<2x256xf32>
    %8 = arith.maximumf %5, %7 : vector<2x256xf32>
    %c0_6 = arith.constant 0 : index
    %c0_7 = arith.constant 0 : index
    %9 = vector.load %arg4[%c0_6, %c0_7] : memref<256x8xf32, #tpu.memory_space<vmem>>, vector<256x8xf32>
    %cst_8 = arith.constant dense<0.000000e+00> : vector<2x8xf32>
    %10 = tpu.matmul %8, %9, %cst_8 {dimension_numbers = #tpu.dot_dimension_numbers<[1], [0], [0], [1], [0, 0, 1, 1], [], []>} : vector<2x256xf32>, vector<256x8xf32>, vector<2x8xf32> -> vector<2x8xf32>
    %c0_9 = arith.constant 0 : index
    %c0_10 = arith.constant 0 : index
    %11 = memref.load %arg5[%c0_9, %c0_10] : memref<1x1xf32, #tpu.memory_space<smem>>
    %12 = vector.broadcast %11 : f32 to vector<2x8xf32>
    %13 = arith.addf %10, %12 : vector<2x8xf32>
    %c0_11 = arith.constant 0 : index
    %c0_12 = arith.constant 0 : index
    %14 = vector.load %arg6[%c0_11, %c0_12] : memref<2x8xf32, #tpu.memory_space<vmem>>, vector<2x8xf32>
    tpu.vector_store %arg6[%c0_11, %c0_12], %13 {strides = array<i32>} : memref<2x8xf32, #tpu.memory_space<vmem>>, vector<2x8xf32>,
    return
  }
  func.func @transform_0(%arg0: i32) -> (i32, i32) {
    %c0_i32 = arith.constant 0 : i32
    %c0_i32_0 = arith.constant 0 : i32
    return %arg0, %c0_i32 : i32, i32
  }
  func.func @transform_1(%arg0: i32) -> (i32, i32) {
    %c0_i32 = arith.constant 0 : i32
    %c0_i32_0 = arith.constant 0 : i32
    %c0_i32_1 = arith.constant 0 : i32
    return %c0_i32, %c0_i32_0 : i32, i32
  }
  func.func @transform_2(%arg0: i32) -> (i32, i32) {
    %c0_i32 = arith.constant 0 : i32
    %c0_i32_0 = arith.constant 0 : i32
    %c0_i32_1 = arith.constant 0 : i32
    return %c0_i32, %c0_i32_0 : i32, i32
  }
  func.func @transform_3(%arg0: i32) -> (i32, i32) {
    %c0_i32 = arith.constant 0 : i32
    %c0_i32_0 = arith.constant 0 : i32
    %c0_i32_1 = arith.constant 0 : i32
    return %c0_i32, %c0_i32_0 : i32, i32
  }
  func.func @transform_4(%arg0: i32) -> (i32, i32) {
    %c0_i32 = arith.constant 0 : i32
    %c0_i32_0 = arith.constant 0 : i32
    %c0_i32_1 = arith.constant 0 : i32
    return %c0_i32, %c0_i32_0 : i32, i32
  }
  func.func @transform_5(%arg0: i32) -> (i32, i32) {
    %c0_i32 = arith.constant 0 : i32
    %c0_i32_0 = arith.constant 0 : i32
    return %arg0, %c0_i32 : i32, i32
  }
}

</mosaic_0001>

<llo_original>
// kernel: tpu_custom_call.1
$region0: #{tpu_custom_call.1}
  #allocation0 [shape = 'u32[]', space=smem, size = 0x4, offset = 0x4, fixed_abs, tag = 'smem constant byte address 0x4 - core index']
  #allocation1 [shape = 'u32[144,128]{1,0:T(1,128)}', space=vmem, size = 0x12000, scoped, tag = 'internal scratch']
  #allocation2 [shape = 'f32[1,1]{1,0:T(1,128)S(6)}', space=smem, size = 0x200, scoped, tag = 'scoped memory for tpu_custom_call.1']
  %s0 = inlined_call_operand.vmem [shape: f32[2,128], index: 0, kind: input, shape index: {}]
  %s1 = inlined_call_operand.vmem [shape: f32[128,256], index: 1, kind: input, shape index: {}]
  %s2 = inlined_call_operand.vmem [shape: f32[1,256], index: 2, kind: input, shape index: {}]
  %s3 = inlined_call_operand.vmem [shape: f32[256,8], index: 3, kind: input, shape index: {}]
  %s4 = inlined_call_operand.<no memory space> [shape: f32[1,1], index: 4, kind: input, shape index: {}]
  %s5 = inlined_call_operand.hbm [shape: f32[2,8], index: 5, kind: output, shape index: {}]
  %s6 = sld [smem:[#allocation0]]
  $region30: #{tpu_custom_call.1} parent=0
    _
  %s8 = ssub.s32 1, %s6
  %s9 = scalar_select 0, %s8, %s6
  %10 = sst [smem:[#allocation2]] %s4
  $region1: #{tpu_custom_call.1} parent=0
    #allocation3 [shape = 'u8[1024]{0}', space=vmem, size = 0x400, scoped, tag = 'output window, operand 0, single buffered']
    #allocation4 [shape = 's32[1]{0}', space=sflag, size = 0x4, scoped, tag = 'scoped memory for tpu_custom_call.1']
    %11 = vsyncpa [#allocation4], 0
    // Predicated region
    $region2: #{tpu_custom_call.1} parent=1 // pred_check
      _
    $region3: #{tpu_custom_call.1} parent=1 // pred_check_branch
      %13 = sbr.rel (0) target = $region5
    $region4: #{tpu_custom_call.1} parent=1 // pred_region
      _
    $region5: #{tpu_custom_call.1} parent=1 // pred_fallthru
      _
    // Predicated region
    $region6: #{tpu_custom_call.1} parent=1 // pred_check
      _
    $region7: #{tpu_custom_call.1} parent=1 // pred_check_branch
      %15 = sbr.rel (0) target = $region9
    $region8: #{tpu_custom_call.1} parent=1 // pred_region
      _
    $region9: #{tpu_custom_call.1} parent=1 // pred_fallthru
      _
    // Predicated region
    $region10: #{tpu_custom_call.1} parent=1 // pred_check
      _
    $region11: #{tpu_custom_call.1} parent=1 // pred_check_branch
      %17 = sbr.rel (0) target = $region13
    $region12: #{tpu_custom_call.1} parent=1 // pred_region
      _
    $region13: #{tpu_custom_call.1} parent=1 // pred_fallthru
      _
    // Predicated region
    $region14: #{tpu_custom_call.1} parent=1 // pred_check
      _
    $region15: #{tpu_custom_call.1} parent=1 // pred_check_branch
      %19 = sbr.rel (0) target = $region17
    $region16: #{tpu_custom_call.1} parent=1 // pred_region
      _
    $region17: #{tpu_custom_call.1} parent=1 // pred_fallthru
      _
    // Predicated region
    $region18: #{tpu_custom_call.1} parent=1 // pred_check
      _
    $region19: #{tpu_custom_call.1} parent=1 // pred_check_branch
      %21 = sbr.rel (0) target = $region21
    $region20: #{tpu_custom_call.1} parent=1 // pred_region
      _
    $region21: #{tpu_custom_call.1} parent=1 // pred_fallthru
      _
    %v22 = vld [vmem:[%s0] sm:$0x3]
    %v23 = vld [vmem:[%s1] sm:$0xff]
    %v24 = vld [vmem:[%s1 + $0x8] sm:$0xff]
    %v25 = vld [vmem:[%s1 + $0x10] sm:$0xff]
    %v26 = vld [vmem:[%s1 + $0x18] sm:$0xff]
    %v27 = vld [vmem:[%s1 + $0x20] sm:$0xff]
    %v28 = vld [vmem:[%s1 + $0x28] sm:$0xff]
    %v29 = vld [vmem:[%s1 + $0x30] sm:$0xff]
    %v30 = vld [vmem:[%s1 + $0x38] sm:$0xff]
    %v31 = vld [vmem:[%s1 + $0x40] sm:$0xff]
    %v32 = vld [vmem:[%s1 + $0x48] sm:$0xff]
    %v33 = vld [vmem:[%s1 + $0x50] sm:$0xff]
    %v34 = vld [vmem:[%s1 + $0x58] sm:$0xff]
    %v35 = vld [vmem:[%s1 + $0x60] sm:$0xff]
    %v36 = vld [vmem:[%s1 + $0x68] sm:$0xff]
    %v37 = vld [vmem:[%s1 + $0x70] sm:$0xff]
    %v38 = vld [vmem:[%s1 + $0x78] sm:$0xff]
    %v39 = vld [vmem:[%s1 + $0x80] sm:$0xff]
    %v40 = vld [vmem:[%s1 + $0x88] sm:$0xff]
    %v41 = vld [vmem:[%s1 + $0x90] sm:$0xff]
    %v42 = vld [vmem:[%s1 + $0x98] sm:$0xff]
    %v43 = vld [vmem:[%s1 + $0xa0] sm:$0xff]
    %v44 = vld [vmem:[%s1 + $0xa8] sm:$0xff]
    %v45 = vld [vmem:[%s1 + $0xb0] sm:$0xff]
    %v46 = vld [vmem:[%s1 + $0xb8] sm:$0xff]
    %v47 = vld [vmem:[%s1 + $0xc0] sm:$0xff]
    %v48 = vld [vmem:[%s1 + $0xc8] sm:$0xff]
    %v49 = vld [vmem:[%s1 + $0xd0] sm:$0xff]
    %v50 = vld [vmem:[%s1 + $0xd8] sm:$0xff]
    %v51 = vld [vmem:[%s1 + $0xe0] sm:$0xff]
    %v52 = vld [vmem:[%s1 + $0xe8] sm:$0xff]
    %v53 = vld [vmem:[%s1 + $0xf0] sm:$0xff]
    %v54 = vld [vmem:[%s1 + $0xf8] sm:$0xff]
    %v55 = vld [vmem:[%s2] sm:$0x3]
    %v57 = vlaneseq
    %v58 = vshrl.u32 %v57, 7
    %v59 = vsub.s32 0, %v58
    %v60 = vrot.slane %v55, %v59
    %v61 = vlaneseq
    %v62 = vshrl.u32 %v61, 7
    %v63 = vsub.s32 1, %v62
    %v64 = vrot.slane %v55, %v63
    %67 = vmatprep.subr.mxu0 %v24
    %68 = vmatpush1.msra.mxu0 %v23
    %69 = vmatprep.subr.mxu0 %v26
    %70 = vmatpush1.msra.mxu0 %v25
    %71 = vmatprep.subr.mxu0 %v28
    %72 = vmatpush1.msra.mxu0 %v27
    %73 = vmatprep.subr.mxu0 %v30
    %74 = vmatpush1.msra.mxu0 %v29
    %75 = vmatprep.subr.mxu0 %v32
    %76 = vmatpush1.msra.mxu0 %v31
    %77 = vmatprep.subr.mxu0 %v34
    %78 = vmatpush1.msra.mxu0 %v33
    %79 = vmatprep.subr.mxu0 %v36
    %80 = vmatpush1.msra.mxu0 %v35
    %81 = vmatprep.subr.mxu0 %v38
    %82 = vmatpush1.msra.mxu0 %v37
    %83 = vmatprep.subr.mxu0 %v40
    %84 = vmatpush1.msra.mxu0 %v39
    %85 = vmatprep.subr.mxu0 %v42
    %86 = vmatpush1.msra.mxu0 %v41
    %87 = vmatprep.subr.mxu0 %v44
    %88 = vmatpush1.msra.mxu0 %v43
    %89 = vmatprep.subr.mxu0 %v46
    %90 = vmatpush1.msra.mxu0 %v45
    %91 = vmatprep.subr.mxu0 %v48
    %92 = vmatpush1.msra.mxu0 %v47
    %93 = vmatprep.subr.mxu0 %v50
    %94 = vmatpush1.msra.mxu0 %v49
    %95 = vmatprep.subr.mxu0 %v52
    %96 = vmatpush1.msra.mxu0 %v51
    %97 = vmatprep.subr.mxu0 %v54
    %98 = vmatpush1.msra.mxu0 %v53
    %99 = vmatprep.subr.mxu0 0.0
    %100 = vmatpush1.msra.mxu0 0.0
    %101 = vmatprep.subr.mxu0 0.0
    %102 = vmatpush1.msra.mxu0 0.0
    %103 = vmatprep.subr.mxu0 0.0
    %104 = vmatpush1.msra.mxu0 0.0
    %105 = vmatprep.subr.mxu0 0.0
    %106 = vmatpush1.msra.mxu0 0.0
    %107 = vmatprep.subr.mxu0 0.0
    %108 = vmatpush1.msra.mxu0 0.0
    %109 = vmatprep.subr.mxu0 0.0
    %110 = vmatpush1.msra.mxu0 0.0
    %111 = vmatprep.subr.mxu0 0.0
    %112 = vmatpush1.msra.mxu0 0.0
    %113 = vmatprep.subr.mxu0 0.0
    %114 = vmatpush1.msra.mxu0 0.0
    %115 = vmatprep.subr.mxu0 0.0
    %116 = vmatpush1.msra.mxu0 0.0
    %117 = vmatprep.subr.mxu0 0.0
    %118 = vmatpush1.msra.mxu0 0.0
    %119 = vmatprep.subr.mxu0 0.0
    %120 = vmatpush1.msra.mxu0 0.0
    %121 = vmatprep.subr.mxu0 0.0
    %122 = vmatpush1.msra.mxu0 0.0
    %123 = vmatprep.subr.mxu0 0.0
    %124 = vmatpush1.msra.mxu0 0.0
    %125 = vmatprep.subr.mxu0 0.0
    %126 = vmatpush1.msra.mxu0 0.0
    %127 = vmatprep.subr.mxu0 0.0
    %128 = vmatpush1.msra.mxu0 0.0
    %129 = vmatprep.subr.mxu0 0.0
    %130 = vmatpush1.msra.mxu0 0.0
    %131 = vmatprep.mubr.f32.mxu0 0.0
    %132 = vmatmul.mubr.f32.gmra.mrb[0].mxu0 %v22
    %v133 = vpop.f32.mrb[0].mxu0
    %v134 = vadd.f32 %v60, %v133
    %v135 = vpop.f32.mrb[0].mxu0
    %v136 = vadd.f32 %v64, %v135
    %137 = vdwg.mxu0
    %v138 = vmul.f32 %v134, 0.2
    %v139 = vmul.f32 %v136, 0.2
    %v140 = vmax.f32 %v134, %v138
    %v141 = vmax.f32 %v136, %v139
    %v142 = vld [vmem:[%s3] sm:$0xff]
    %v143 = vld [vmem:[%s3 + $0x8] sm:$0xff]
    %v144 = vld [vmem:[%s3 + $0x10] sm:$0xff]
    %v145 = vld [vmem:[%s3 + $0x18] sm:$0xff]
    %v146 = vld [vmem:[%s3 + $0x20] sm:$0xff]
    %v147 = vld [vmem:[%s3 + $0x28] sm:$0xff]
    %v148 = vld [vmem:[%s3 + $0x30] sm:$0xff]
    %v149 = vld [vmem:[%s3 + $0x38] sm:$0xff]
    %v150 = vld [vmem:[%s3 + $0x40] sm:$0xff]
    %v151 = vld [vmem:[%s3 + $0x48] sm:$0xff]
    %v152 = vld [vmem:[%s3 + $0x50] sm:$0xff]
    %v153 = vld [vmem:[%s3 + $0x58] sm:$0xff]
    %v154 = vld [vmem:[%s3 + $0x60] sm:$0xff]
    %v155 = vld [vmem:[%s3 + $0x68] sm:$0xff]
    %v156 = vld [vmem:[%s3 + $0x70] sm:$0xff]
    %v157 = vld [vmem:[%s3 + $0x78] sm:$0xff]
    %v158 = vld [vmem:[%s3 + $0x80] sm:$0xff]
    %v159 = vld [vmem:[%s3 + $0x88] sm:$0xff]
    %v160 = vld [vmem:[%s3 + $0x90] sm:$0xff]
    %v161 = vld [vmem:[%s3 + $0x98] sm:$0xff]
    %v162 = vld [vmem:[%s3 + $0xa0] sm:$0xff]
    %v163 = vld [vmem:[%s3 + $0xa8] sm:$0xff]
    %v164 = vld [vmem:[%s3 + $0xb0] sm:$0xff]
    %v165 = vld [vmem:[%s3 + $0xb8] sm:$0xff]
    %v166 = vld [vmem:[%s3 + $0xc0] sm:$0xff]
    %v167 = vld [vmem:[%s3 + $0xc8] sm:$0xff]
    %v168 = vld [vmem:[%s3 + $0xd0] sm:$0xff]
    %v169 = vld [vmem:[%s3 + $0xd8] sm:$0xff]
    %v170 = vld [vmem:[%s3 + $0xe0] sm:$0xff]
    %v171 = vld [vmem:[%s3 + $0xe8] sm:$0xff]
    %v172 = vld [vmem:[%s3 + $0xf0] sm:$0xff]
    %v173 = vld [vmem:[%s3 + $0xf8] sm:$0xff]
    %s174 = sld [smem:[#allocation2]]
    %v175 = vstv %s174
    %176 = vmatprep.subr.mxu0 0.0
    %177 = vmatpush1.msra.mxu0 %v142
    %178 = vmatprep.subr.mxu0 0.0
    %179 = vmatpush1.msra.mxu0 %v143
    %180 = vmatprep.subr.mxu0 0.0
    %181 = vmatpush1.msra.mxu0 %v144
    %182 = vmatprep.subr.mxu0 0.0
    %183 = vmatpush1.msra.mxu0 %v145
    %184 = vmatprep.subr.mxu0 0.0
    %185 = vmatpush1.msra.mxu0 %v146
    %186 = vmatprep.subr.mxu0 0.0
    %187 = vmatpush1.msra.mxu0 %v147
    %188 = vmatprep.subr.mxu0 0.0
    %189 = vmatpush1.msra.mxu0 %v148
    %190 = vmatprep.subr.mxu0 0.0
    %191 = vmatpush1.msra.mxu0 %v149
    %192 = vmatprep.subr.mxu0 0.0
    %193 = vmatpush1.msra.mxu0 %v150
    %194 = vmatprep.subr.mxu0 0.0
    %195 = vmatpush1.msra.mxu0 %v151
    %196 = vmatprep.subr.mxu0 0.0
    %197 = vmatpush1.msra.mxu0 %v152
    %198 = vmatprep.subr.mxu0 0.0
    %199 = vmatpush1.msra.mxu0 %v153
    %200 = vmatprep.subr.mxu0 0.0
    %201 = vmatpush1.msra.mxu0 %v154
    %202 = vmatprep.subr.mxu0 0.0
    %203 = vmatpush1.msra.mxu0 %v155
    %204 = vmatprep.subr.mxu0 0.0
    %205 = vmatpush1.msra.mxu0 %v156
    %206 = vmatprep.subr.mxu0 0.0
    %207 = vmatpush1.msra.mxu0 %v157
    %208 = vmatprep.subr.mxu0 0.0
    %209 = vmatpush1.msra.mxu0 %v158
    %210 = vmatprep.subr.mxu0 0.0
    %211 = vmatpush1.msra.mxu0 %v159
    %212 = vmatprep.subr.mxu0 0.0
    %213 = vmatpush1.msra.mxu0 %v160
    %214 = vmatprep.subr.mxu0 0.0
    %215 = vmatpush1.msra.mxu0 %v161
    %216 = vmatprep.subr.mxu0 0.0
    %217 = vmatpush1.msra.mxu0 %v162
    %218 = vmatprep.subr.mxu0 0.0
    %219 = vmatpush1.msra.mxu0 %v163
    %220 = vmatprep.subr.mxu0 0.0
    %221 = vmatpush1.msra.mxu0 %v164
    %222 = vmatprep.subr.mxu0 0.0
    %223 = vmatpush1.msra.mxu0 %v165
    %224 = vmatprep.subr.mxu0 0.0
    %225 = vmatpush1.msra.mxu0 %v166
    %226 = vmatprep.subr.mxu0 0.0
    %227 = vmatpush1.msra.mxu0 %v167
    %228 = vmatprep.subr.mxu0 0.0
    %229 = vmatpush1.msra.mxu0 %v168
    %230 = vmatprep.subr.mxu0 0.0
    %231 = vmatpush1.msra.mxu0 %v169
    %232 = vmatprep.subr.mxu0 0.0
    %233 = vmatpush1.msra.mxu0 %v170
    %234 = vmatprep.subr.mxu0 0.0
    %235 = vmatpush1.msra.mxu0 %v171
    %236 = vmatprep.subr.mxu0 0.0
    %237 = vmatpush1.msra.mxu0 %v172
    %238 = vmatprep.subr.mxu0 0.0
    %239 = vmatpush1.msra.mxu0 %v173
    %240 = vmatprep.mubr.f32.mxu0 %v141
    %241 = vmatmul.mubr.f32.gmra.mrb[0].mxu0 %v140
    %v242 = vpop.f32.mrb[0].mxu0
    %v243 = vadd.f32 %v175, %v242
    %v244 = vpop.f32.mrb[0].mxu0
    %245 = vdwg.mxu0
    %vm246 = vcmask 58368
    %247 = vst.msk [vmem:[#allocation3] sm:$0x3] %vm246, %v243
    // Predicated region
    $region22: #{tpu_custom_call.1} parent=1 // pred_check
      _
    $region23: #{tpu_custom_call.1} parent=1 // pred_check_branch
      %249 = sbr.rel (0) target = $region25
    $region24: #{tpu_custom_call.1} parent=1 // pred_region
      %s251 = ssub.s32 32, 32
      %252 = vsyncadd [#allocation4], %s251
      %s254 = sshll.u32 [#allocation3], 4
      %s255 = int_to_ptr.vmem [resolvable:$true] %s254
      %257 = dma.vmem_to_hbm [thread:$0]  %s255, 32, %s5, [#allocation4]
    $region25: #{tpu_custom_call.1} parent=1 // pred_fallthru
      _
    // Predicated region
    $region26: #{tpu_custom_call.1} parent=1 // pred_check
      _
    $region27: #{tpu_custom_call.1} parent=1 // pred_check_branch
      %259 = sbr.rel (0) target = $region29
    $region28: #{tpu_custom_call.1} parent=1 // pred_region
      %260 = dma.done [#allocation4], 32
    $region29: #{tpu_custom_call.1} parent=1 // pred_fallthru
      _
    %261 = vsyncpa [#allocation4], 1

</llo_original>
